<compile_context>
chip_gen: v7x
topology: tpu7x:2x2x1
jax: 0.10.0
libtpu: 0.0.40
codegen_flags: <defaults>
</compile_context>

<pallas_src>
import functools

import jax
import jax.numpy as jnp
from jax import lax
from jax.experimental import pallas as pl
from jax.experimental.pallas import tpu as pltpu

NEG_SLOPE = 0.01        # F.leaky_relu default negative slope
NORM_EPS_SQ = 1e-20     # floor on sum-of-squares (~ F.normalize eps=1e-12 on the norm)
VMEM_LIMIT = 64 * 1024 * 1024
MAX_TILE = 512          # max row/reduction tile for propagation & embeds


def _round_up(x, m):
    return ((x + m - 1) // m) * m


def _pad_and_tile(n, max_tile=MAX_TILE):
    """Pad n to a bf16-friendly multiple and pick a tile that divides it."""
    n16 = _round_up(n, 16)
    tile = min(max_tile, n16)
    n_pad = _round_up(n16, tile)
    # shrink tile if padding overhead exceeds ~25%
    while tile > 16 and (n_pad - n16) * 4 > n16:
        tile //= 2
        n_pad = _round_up(n16, tile)
    return n_pad, tile


def _l2_normalize(x):
    ss = jnp.sum(x * x, axis=1, keepdims=True)
    return x * lax.rsqrt(jnp.maximum(ss, NORM_EPS_SQ))


# ---------------------------------------------------------------------------
# Kernel 1: item embedding for both modalities (GCN MLP stack + normalize),
# packed as [v | t | 0-pad] into a lane-dense (rows, d_pad) bf16 slab.
# ---------------------------------------------------------------------------
def _item_embed_kernel(vf_ref, tf_ref, vw1_ref, vb1_ref, vw2_ref, vb2_ref,
                       tw1_ref, tb1_ref, tw2_ref, tb2_ref, o_ref, *, d_lat):
    def mlp(f, w1, b1, w2, b2):
        h = jnp.dot(f, w1, preferred_element_type=jnp.float32) + b1
        h = jnp.where(h >= 0.0, h, NEG_SLOPE * h)               # leaky_relu
        return jnp.dot(h.astype(jnp.bfloat16), w2,
                       preferred_element_type=jnp.float32) + b2

    tv = _l2_normalize(mlp(vf_ref[...], vw1_ref[...], vb1_ref[...],
                           vw2_ref[...], vb2_ref[...]))
    tt = _l2_normalize(mlp(tf_ref[...], tw1_ref[...], tb1_ref[...],
                           tw2_ref[...], tb2_ref[...]))
    o_ref[...] = jnp.zeros_like(o_ref)
    o_ref[:, :d_lat] = tv.astype(o_ref.dtype)
    o_ref[:, d_lat:2 * d_lat] = tt.astype(o_ref.dtype)


def run_item_embed(v_feat, t_feat, vw1, vb1, vw2, vb2, tw1, tb1, tw2, tb2,
                   d_lat, d_pad, i_pad, tile):
    n_item, dv = v_feat.shape
    dt = t_feat.shape[1]
    vf = jnp.pad(v_feat, ((0, i_pad - n_item), (0, 0))).astype(jnp.bfloat16)
    tf = jnp.pad(t_feat, ((0, i_pad - n_item), (0, 0))).astype(jnp.bfloat16)
    vw1b, vw2b = vw1.astype(jnp.bfloat16), vw2.astype(jnp.bfloat16)
    tw1b, tw2b = tw1.astype(jnp.bfloat16), tw2.astype(jnp.bfloat16)
    params = (vw1b, vb1, vw2b, vb2, tw1b, tb1, tw2b, tb2)
    return pl.pallas_call(
        functools.partial(_item_embed_kernel, d_lat=d_lat),
        out_shape=jax.ShapeDtypeStruct((i_pad, d_pad), jnp.bfloat16),
        grid=(i_pad // tile,),
        in_specs=[pl.BlockSpec((tile, dv), lambda i: (i, 0)),
                  pl.BlockSpec((tile, dt), lambda i: (i, 0))]
                 + [pl.BlockSpec(p.shape, lambda i: (0, 0)) for p in params],
        out_specs=pl.BlockSpec((tile, d_pad), lambda i: (i, 0)),
        compiler_params=pltpu.CompilerParams(
            dimension_semantics=("parallel",),
            vmem_limit_bytes=VMEM_LIMIT),
    )(vf, tf, *params)


# ---------------------------------------------------------------------------
# Kernel 2: user preference rows, normalized and packed [v | t | 0-pad] (bf16).
# ---------------------------------------------------------------------------
def _pref_embed_kernel(vp_ref, tp_ref, o_ref, *, d_lat):
    nv = _l2_normalize(vp_ref[...])
    nt = _l2_normalize(tp_ref[...])
    o_ref[...] = jnp.zeros_like(o_ref)
    o_ref[:, :d_lat] = nv.astype(o_ref.dtype)
    o_ref[:, d_lat:2 * d_lat] = nt.astype(o_ref.dtype)


def run_pref_embed(v_pref, t_pref, d_lat, d_pad, u_pad, tile):
    n_user = v_pref.shape[0]
    vp = jnp.pad(v_pref, ((0, u_pad - n_user), (0, 0)))
    tp = jnp.pad(t_pref, ((0, u_pad - n_user), (0, 0)))
    return pl.pallas_call(
        functools.partial(_pref_embed_kernel, d_lat=d_lat),
        out_shape=jax.ShapeDtypeStruct((u_pad, d_pad), jnp.bfloat16),
        grid=(u_pad // tile,),
        in_specs=[pl.BlockSpec((tile, d_lat), lambda i: (i, 0)),
                  pl.BlockSpec((tile, d_lat), lambda i: (i, 0))],
        out_specs=pl.BlockSpec((tile, d_pad), lambda i: (i, 0)),
        compiler_params=pltpu.CompilerParams(
            dimension_semantics=("parallel",),
            vmem_limit_bytes=VMEM_LIMIT),
    )(vp, tp)


# ---------------------------------------------------------------------------
# Kernels 3/4: bipartite graph propagation.
#   hop 1 :  H_rows = A_block @ X          (bf16 out, f32 accumulation)
#   hop 2 :  XHAT   = A_block @ H + H + X  (f32 out)
# A is streamed in (tm, tk) bf16 tiles; the RHS slab is resident in VMEM for
# the whole hop (full-extent BlockSpec, fetched once) and sliced with pl.ds.
# NOTE(v7x): if the resident RHS slab grows past ~16-24 MiB per TensorCore,
# switch in_specs[1] back to streamed (tk, d_pad) tiles.
# ---------------------------------------------------------------------------
def _prop_kernel(a_ref, x_ref, o_ref, acc_ref, *, tk):
    k = pl.program_id(1)

    @pl.when(k == 0)
    def _():
        acc_ref[...] = jnp.zeros_like(acc_ref)

    start = pl.multiple_of(k * tk, tk)
    acc_ref[...] += jnp.dot(a_ref[...], x_ref[pl.ds(start, tk), :],
                            preferred_element_type=jnp.float32)

    @pl.when(k == pl.num_programs(1) - 1)
    def _():
        o_ref[...] = acc_ref[...].astype(o_ref.dtype)


def _prop_residual_kernel(a_ref, x_ref, hres_ref, xres_ref, o_ref, acc_ref, *, tk):
    k = pl.program_id(1)

    @pl.when(k == 0)
    def _():
        acc_ref[...] = jnp.zeros_like(acc_ref)

    start = pl.multiple_of(k * tk, tk)
    acc_ref[...] += jnp.dot(a_ref[...], x_ref[pl.ds(start, tk), :],
                            preferred_element_type=jnp.float32)

    @pl.when(k == pl.num_programs(1) - 1)
    def _():
        o_ref[...] = (acc_ref[...]
                      + hres_ref[...].astype(jnp.float32)
                      + xres_ref[...].astype(jnp.float32)).astype(o_ref.dtype)


def run_prop(a_pad, x_slab, h_res=None, x_res=None, *, tm, tk, out_dtype):
    m_pad, k_pad = a_pad.shape
    d_pad = x_slab.shape[1]
    grid = (m_pad // tm, k_pad // tk)
    in_specs = [pl.BlockSpec((tm, tk), lambda i, k: (i, k)),
                pl.BlockSpec((k_pad, d_pad), lambda i, k: (0, 0))]   # resident RHS
    args = [a_pad, x_slab]
    if h_res is None:
        kernel = functools.partial(_prop_kernel, tk=tk)
    else:
        kernel = functools.partial(_prop_residual_kernel, tk=tk)
        in_specs += [pl.BlockSpec((tm, d_pad), lambda i, k: (i, 0)),
                     pl.BlockSpec((tm, d_pad), lambda i, k: (i, 0))]
        args += [h_res, x_res]
    return pl.pallas_call(
        kernel,
        out_shape=jax.ShapeDtypeStruct((m_pad, d_pad), out_dtype),
        grid=grid,
        in_specs=in_specs,
        out_specs=pl.BlockSpec((tm, d_pad), lambda i, k: (i, 0)),
        scratch_shapes=[pltpu.VMEM((tm, d_pad), jnp.float32)],
        compiler_params=pltpu.CompilerParams(
            dimension_semantics=("parallel", "arbitrary"),
            vmem_limit_bytes=VMEM_LIMIT),
    )(*args)


# ---------------------------------------------------------------------------
# Kernel 5: scoring.  scores = ub @ item_rep_T  (lane-dense (8, I_pad) output).
# ub is the already-fused (weighted_sum + user-graph aggregation) user row,
# computed once in the wrapper (topk+1 gather), padded to 8 rows, bf16.
# ---------------------------------------------------------------------------
def _score_kernel(ub_ref, it_ref, o_ref):
    o_ref[...] = jnp.dot(ub_ref[...], it_ref[...],
                         preferred_element_type=jnp.float32)


def run_score(ub_batch, item_rep_t):
    d_lat, i_sc = item_rep_t.shape
    if i_sc % 512 == 0:
        ti = 512
    elif i_sc % 256 == 0:
        ti = 256
    else:
        ti = 128
    return pl.pallas_call(
        _score_kernel,
        out_shape=jax.ShapeDtypeStruct((8, i_sc), jnp.float32),
        grid=(i_sc // ti,),
        in_specs=[pl.BlockSpec((8, d_lat), lambda j: (0, 0)),
                  pl.BlockSpec((d_lat, ti), lambda j: (0, j))],
        out_specs=pl.BlockSpec((8, ti), lambda j: (0, j)),
        compiler_params=pltpu.CompilerParams(
            dimension_semantics=("parallel",),
            vmem_limit_bytes=VMEM_LIMIT),
    )(ub_batch, item_rep_t)


# ---------------------------------------------------------------------------
# Parameter init helpers (deterministic, synthetic)
# ---------------------------------------------------------------------------
def _xavier_normal(key, shape):
    fan_out = shape[0]
    fan_in = shape[-1] if len(shape) > 1 else shape[0]
    std = (2.0 / (fan_in + fan_out)) ** 0.5
    return std * jax.random.normal(key, shape, dtype=jnp.float32)


def _linear_params(key, in_dim, out_dim):
    kw, kb = jax.random.split(key)
    bound = 1.0 / (in_dim ** 0.5)
    w = jax.random.uniform(kw, (in_dim, out_dim), jnp.float32, -bound, bound)
    b = jax.random.uniform(kb, (1, out_dim), jnp.float32, -bound, bound)
    return w, b


class MultiGraphPallas:
    def __init__(self, key, *, num_user, num_item, dim_latent, dim_v, dim_t,
                 user_topk, user_item_dict, construction="weighted_sum"):
        self.num_user = num_user
        self.num_item = num_item
        self.dim_latent = dim_latent
        self.construction = construction
        self.user_item_dict = user_item_dict

        keys = jax.random.split(key, 10)
        # modality features held by the module (self.v_feat / self.t_feat)
        self.v_feat = jax.random.normal(keys[0], (num_item, dim_v), jnp.float32)
        self.t_feat = jax.random.normal(keys[1], (num_item, dim_t), jnp.float32)
        # per-modality GCN parameters
        self.v_pref = _xavier_normal(keys[2], (num_user, dim_latent))
        self.t_pref = _xavier_normal(keys[3], (num_user, dim_latent))
        self.v_w1, self.v_b1 = _linear_params(keys[4], dim_v, 4 * dim_latent)
        self.v_w2, self.v_b2 = _linear_params(keys[5], 4 * dim_latent, dim_latent)
        self.t_w1, self.t_b1 = _linear_params(keys[6], dim_t, 4 * dim_latent)
        self.t_w2, self.t_b2 = _linear_params(keys[7], 4 * dim_latent, dim_latent)
        # weight_u softmax'ed over the 2-axis at init (as in __init__)
        wu = jax.nn.softmax(_xavier_normal(keys[8], (num_user, 2, 1)), axis=1)
        self.wu_v = wu[:, 0, :]                       # (num_user, 1)
        self.wu_t = wu[:, 1, :]                       # (num_user, 1)
        self.user_weight_matrix = _xavier_normal(keys[9], (num_user, user_topk))
        self._adj_cache = None

    def _get_adjacency(self, edge_index, u_pad, i_pad):
        # Bipartite normalized adjacency, built directly in bf16 and padded to
        # the propagation tile grid.  Cached across forward() calls.
        # TODO(synk): Base_gcn source not provided; symmetric D^-1/2 A D^-1/2
        # aggregation without self-loops assumed.  Cache assumes edge_index is
        # static across calls.
        if self._adj_cache is not None:
            return self._adj_cache
        u_cnt, i_cnt = self.num_user, self.num_item
        u_idx = edge_index[:, 0]
        it_idx = edge_index[:, 1] - u_cnt
        a = jnp.zeros((u_cnt, i_cnt), jnp.float32).at[u_idx, it_idx].set(1.0)
        deg_u = jnp.maximum(a.sum(axis=1), 1.0)
        deg_i = jnp.maximum(a.sum(axis=0), 1.0)
        a = a * lax.rsqrt(deg_u)[:, None] * lax.rsqrt(deg_i)[None, :]
        a_ui = jnp.pad(a, ((0, u_pad - u_cnt), (0, i_pad - i_cnt))).astype(jnp.bfloat16)
        a_iu = jnp.pad(a.T, ((0, i_pad - i_cnt), (0, u_pad - u_cnt))).astype(jnp.bfloat16)
        self._adj_cache = (a_ui, a_iu)
        return self._adj_cache

    def forward(self, curuser, edge_index, user_graph, v_feat_hero, t_feat_hero):
        u_cnt, i_cnt, d = self.num_user, self.num_item, self.dim_latent
        d_pad = max(128, _round_up(2 * d, 128))
        u_pad, t_u = _pad_and_tile(u_cnt)
        i_pad, t_i = _pad_and_tile(i_cnt)

        a_ui, a_iu = self._get_adjacency(edge_index, u_pad, i_pad)

        v_feat = self.v_feat + v_feat_hero
        t_feat = self.t_feat + t_feat_hero

        # fused per-modality embeddings, emitted as padded bf16 slabs
        x_item = run_item_embed(v_feat, t_feat,
                                self.v_w1, self.v_b1, self.v_w2, self.v_b2,
                                self.t_w1, self.t_b1, self.t_w2, self.t_b2,
                                d, d_pad, i_pad, t_i)               # (i_pad, d_pad) bf16
        x_user = run_pref_embed(self.v_pref, self.t_pref,
                                d, d_pad, u_pad, t_u)               # (u_pad, d_pad) bf16

        # hop 1 (bipartite): only the non-zero quadrants of A are streamed
        h_user = run_prop(a_ui, x_item, tm=t_u, tk=t_i, out_dtype=jnp.bfloat16)
        h_item = run_prop(a_iu, x_user, tm=t_i, tk=t_u, out_dtype=jnp.bfloat16)
        # hop 2 fused with the residual: x_hat = h + x + h_1
        xhat_user = run_prop(a_ui, h_item, h_res=h_user, x_res=x_user,
                             tm=t_u, tk=t_i, out_dtype=jnp.float32)
        xhat_item = run_prop(a_iu, h_user, h_res=h_item, x_res=x_item,
                             tm=t_i, tk=t_u, out_dtype=jnp.float32)

        # weighted_sum user fusion + user-graph aggregation: only curuser and
        # its topk neighbours matter, so this is a tiny JAX gather.
        rows = jnp.concatenate([jnp.asarray([curuser], jnp.int32),
                                jnp.asarray(user_graph)[curuser].astype(jnp.int32)])
        xr = xhat_user[rows]                                        # (topk+1, d_pad)
        urep_rows = xr[:, :d] * self.wu_v[rows] + xr[:, d:2 * d] * self.wu_t[rows]
        agg_w = jnp.concatenate([jnp.ones((1,), jnp.float32),
                                 self.user_weight_matrix[curuser]])
        ub = agg_w @ urep_rows                                      # (d,)
        ub_batch = jnp.zeros((8, d), jnp.float32).at[0].set(ub).astype(jnp.bfloat16)

        # item representation, pre-transposed + bf16 for the lane-dense score matmul
        item_rep = xhat_item[:i_cnt, :d] + xhat_item[:i_cnt, d:2 * d]
        i_sc = _round_up(i_cnt, 128)
        item_rep_t = jnp.pad(item_rep, ((0, i_sc - i_cnt), (0, 0))).T.astype(jnp.bfloat16)

        scores = run_score(ub_batch, item_rep_t)[0, :i_cnt]

        # mask already-seen items, then rank (torch.topk; k clipped to num_item)
        col = jnp.asarray(sorted(self.user_item_dict[int(curuser)]),
                          dtype=jnp.int32) - u_cnt
        scores = scores.at[col].set(1e-05)
        k = min(6259, i_cnt)
        score_of_rank_list, index_of_rank_list = jax.lax.top_k(scores, k)
        return index_of_rank_list, score_of_rank_list


if __name__ == "__main__":
    num_user, num_item = 8, 16
    dim_latent, dim_v, dim_t = 32, 64, 48
    user_topk = 4

    key = jax.random.PRNGKey(0)
    k_mod, k_hv, k_ht = jax.random.split(key, 3)

    # deterministic user-item interactions (item nodes use global indices >= num_user)
    edges = []
    user_item_dict = {}
    for u in range(num_user):
        items = [num_user + (u * 3 + j) % num_item for j in range(3)]
        user_item_dict[u] = set(items)
        edges.extend((u, it) for it in items)
    edge_index = jnp.asarray(edges, dtype=jnp.int32)            # (E, 2)

    user_graph = jnp.asarray(
        [[(u + 1 + j) % num_user for j in range(user_topk)] for u in range(num_user)],
        dtype=jnp.int32)                                        # (num_user, topk)

    model = MultiGraphPallas(
        k_mod, num_user=num_user, num_item=num_item, dim_latent=dim_latent,
        dim_v=dim_v, dim_t=dim_t, user_topk=user_topk,
        user_item_dict=user_item_dict)

    v_feat_hero = 0.1 * jax.random.normal(k_hv, (num_item, dim_v), jnp.float32)
    t_feat_hero = 0.1 * jax.random.normal(k_ht, (num_item, dim_t), jnp.float32)

    curuser = 3
    idx_rank, score_rank = model.forward(curuser, edge_index, user_graph,
                                         v_feat_hero, t_feat_hero)
    jax.block_until_ready((idx_rank, score_rank))
    print("KERNEL_OK")
</pallas_src>

<mosaic_0001>
module attributes {stable_mosaic.version = 11 : i64} {
  func.func @_item_embed_kernel(%arg0: i32, %arg1: memref<16x64xbf16, #tpu.memory_space<vmem>>, %arg2: memref<16x48xbf16, #tpu.memory_space<vmem>>, %arg3: memref<64x128xbf16, #tpu.memory_space<vmem>>, %arg4: memref<1x128xf32, #tpu.memory_space<vmem>>, %arg5: memref<128x32xbf16, #tpu.memory_space<vmem>>, %arg6: memref<1x32xf32, #tpu.memory_space<vmem>>, %arg7: memref<48x128xbf16, #tpu.memory_space<vmem>>, %arg8: memref<1x128xf32, #tpu.memory_space<vmem>>, %arg9: memref<128x32xbf16, #tpu.memory_space<vmem>>, %arg10: memref<1x32xf32, #tpu.memory_space<vmem>>, %arg11: memref<16x128xbf16, #tpu.memory_space<vmem>>) attributes {dimension_semantics = [#tpu.dimension_semantics<parallel>], iteration_bounds = array<i64: 1>, scalar_prefetch = 0 : i64, scratch_operands = 0 : i64, tpu.core_type = #tpu.core_type<tc>, window_params = [{transform_indices = @transform_0, window_bounds = array<i64: 16, 64>}, {transform_indices = @transform_1, window_bounds = array<i64: 16, 48>}, {pipeline_mode = #tpu.pipeline_mode<synchronous>, transform_indices = @transform_2, window_bounds = array<i64: 64, 128>}, {pipeline_mode = #tpu.pipeline_mode<synchronous>, transform_indices = @transform_3, window_bounds = array<i64: 1, 128>}, {pipeline_mode = #tpu.pipeline_mode<synchronous>, transform_indices = @transform_4, window_bounds = array<i64: 128, 32>}, {pipeline_mode = #tpu.pipeline_mode<synchronous>, transform_indices = @transform_5, window_bounds = array<i64: 1, 32>}, {pipeline_mode = #tpu.pipeline_mode<synchronous>, transform_indices = @transform_6, window_bounds = array<i64: 48, 128>}, {pipeline_mode = #tpu.pipeline_mode<synchronous>, transform_indices = @transform_7, window_bounds = array<i64: 1, 128>}, {pipeline_mode = #tpu.pipeline_mode<synchronous>, transform_indices = @transform_8, window_bounds = array<i64: 128, 32>}, {pipeline_mode = #tpu.pipeline_mode<synchronous>, transform_indices = @transform_9, window_bounds = array<i64: 1, 32>}, {transform_indices = @transform_10, window_bounds = array<i64: 16, 128>}]} {
    %c0 = arith.constant 0 : index
    %c0_0 = arith.constant 0 : index
    %0 = vector.load %arg1[%c0, %c0_0] : memref<16x64xbf16, #tpu.memory_space<vmem>>, vector<16x64xbf16>
    %c0_1 = arith.constant 0 : index
    %c0_2 = arith.constant 0 : index
    %1 = vector.load %arg3[%c0_1, %c0_2] : memref<64x128xbf16, #tpu.memory_space<vmem>>, vector<64x128xbf16>
    %c0_3 = arith.constant 0 : index
    %c0_4 = arith.constant 0 : index
    %2 = vector.load %arg4[%c0_3, %c0_4] : memref<1x128xf32, #tpu.memory_space<vmem>>, vector<1x128xf32>
    %c0_5 = arith.constant 0 : index
    %c0_6 = arith.constant 0 : index
    %3 = vector.load %arg5[%c0_5, %c0_6] : memref<128x32xbf16, #tpu.memory_space<vmem>>, vector<128x32xbf16>
    %c0_7 = arith.constant 0 : index
    %c0_8 = arith.constant 0 : index
    %4 = vector.load %arg6[%c0_7, %c0_8] : memref<1x32xf32, #tpu.memory_space<vmem>>, vector<1x32xf32>
    %cst = arith.constant dense<0.000000e+00> : vector<16x128xf32>
    %5 = tpu.matmul %0, %1, %cst {dimension_numbers = #tpu.dot_dimension_numbers<[1], [0], [0], [1], [0, 0, 1, 1], [], []>} : vector<16x64xbf16>, vector<64x128xbf16>, vector<16x128xf32> -> vector<16x128xf32>
    %6 = vector.broadcast %2 : vector<1x128xf32> to vector<16x128xf32>
    %7 = arith.addf %5, %6 : vector<16x128xf32>
    %cst_9 = arith.constant 0.000000e+00 : f32
    %8 = vector.broadcast %cst_9 : f32 to vector<16x128xf32>
    %9 = arith.cmpf oge, %7, %8 : vector<16x128xf32>
    %cst_10 = arith.constant 0.00999999977 : f32
    %10 = vector.broadcast %cst_10 : f32 to vector<16x128xf32>
    %11 = arith.mulf %10, %7 : vector<16x128xf32>
    %12 = arith.select %9, %7, %11 : vector<16x128xi1>, vector<16x128xf32>
    %13 = arith.truncf %12 : vector<16x128xf32> to vector<16x128xbf16>
    %cst_11 = arith.constant dense<0.000000e+00> : vector<16x32xf32>
    %14 = tpu.matmul %13, %3, %cst_11 {dimension_numbers = #tpu.dot_dimension_numbers<[1], [0], [0], [1], [0, 0, 1, 1], [], []>} : vector<16x128xbf16>, vector<128x32xbf16>, vector<16x32xf32> -> vector<16x32xf32>
    %15 = vector.broadcast %4 : vector<1x32xf32> to vector<16x32xf32>
    %16 = arith.addf %14, %15 : vector<16x32xf32>
    %17 = arith.mulf %16, %16 : vector<16x32xf32>
    %cst_12 = arith.constant dense<0.000000e+00> : vector<16xf32>
    %18 = vector.multi_reduction <add>, %17, %cst_12 [1] : vector<16x32xf32> to vector<16xf32>
    %19 = vector.shape_cast %18 : vector<16xf32> to vector<16x1xf32>
    %cst_13 = arith.constant 9.99999968E-21 : f32
    %20 = vector.broadcast %cst_13 : f32 to vector<16x1xf32>
    %21 = arith.maximumf %19, %20 : vector<16x1xf32>
    %22 = math.rsqrt %21 : vector<16x1xf32>
    %23 = vector.broadcast %22 : vector<16x1xf32> to vector<16x32xf32>
    %24 = arith.mulf %16, %23 : vector<16x32xf32>
    %c0_14 = arith.constant 0 : index
    %c0_15 = arith.constant 0 : index
    %25 = vector.load %arg2[%c0_14, %c0_15] : memref<16x48xbf16, #tpu.memory_space<vmem>>, vector<16x48xbf16>
    %c0_16 = arith.constant 0 : index
    %c0_17 = arith.constant 0 : index
    %26 = vector.load %arg7[%c0_16, %c0_17] : memref<48x128xbf16, #tpu.memory_space<vmem>>, vector<48x128xbf16>
    %c0_18 = arith.constant 0 : index
    %c0_19 = arith.constant 0 : index
    %27 = vector.load %arg8[%c0_18, %c0_19] : memref<1x128xf32, #tpu.memory_space<vmem>>, vector<1x128xf32>
    %c0_20 = arith.constant 0 : index
    %c0_21 = arith.constant 0 : index
    %28 = vector.load %arg9[%c0_20, %c0_21] : memref<128x32xbf16, #tpu.memory_space<vmem>>, vector<128x32xbf16>
    %c0_22 = arith.constant 0 : index
    %c0_23 = arith.constant 0 : index
    %29 = vector.load %arg10[%c0_22, %c0_23] : memref<1x32xf32, #tpu.memory_space<vmem>>, vector<1x32xf32>
    %cst_24 = arith.constant dense<0.000000e+00> : vector<16x128xf32>
    %30 = tpu.matmul %25, %26, %cst_24 {dimension_numbers = #tpu.dot_dimension_numbers<[1], [0], [0], [1], [0, 0, 1, 1], [], []>} : vector<16x48xbf16>, vector<48x128xbf16>, vector<16x128xf32> -> vector<16x128xf32>
    %31 = vector.broadcast %27 : vector<1x128xf32> to vector<16x128xf32>
    %32 = arith.addf %30, %31 : vector<16x128xf32>
    %cst_25 = arith.constant 0.000000e+00 : f32
    %33 = vector.broadcast %cst_25 : f32 to vector<16x128xf32>
    %34 = arith.cmpf oge, %32, %33 : vector<16x128xf32>
    %cst_26 = arith.constant 0.00999999977 : f32
    %35 = vector.broadcast %cst_26 : f32 to vector<16x128xf32>
    %36 = arith.mulf %35, %32 : vector<16x128xf32>
    %37 = arith.select %34, %32, %36 : vector<16x128xi1>, vector<16x128xf32>
    %38 = arith.truncf %37 : vector<16x128xf32> to vector<16x128xbf16>
    %cst_27 = arith.constant dense<0.000000e+00> : vector<16x32xf32>
    %39 = tpu.matmul %38, %28, %cst_27 {dimension_numbers = #tpu.dot_dimension_numbers<[1], [0], [0], [1], [0, 0, 1, 1], [], []>} : vector<16x128xbf16>, vector<128x32xbf16>, vector<16x32xf32> -> vector<16x32xf32>
    %40 = vector.broadcast %29 : vector<1x32xf32> to vector<16x32xf32>
    %41 = arith.addf %39, %40 : vector<16x32xf32>
    %42 = arith.mulf %41, %41 : vector<16x32xf32>
    %cst_28 = arith.constant dense<0.000000e+00> : vector<16xf32>
    %43 = vector.multi_reduction <add>, %42, %cst_28 [1] : vector<16x32xf32> to vector<16xf32>
    %44 = vector.shape_cast %43 : vector<16xf32> to vector<16x1xf32>
    %cst_29 = arith.constant 9.99999968E-21 : f32
    %45 = vector.broadcast %cst_29 : f32 to vector<16x1xf32>
    %46 = arith.maximumf %44, %45 : vector<16x1xf32>
    %47 = math.rsqrt %46 : vector<16x1xf32>
    %48 = vector.broadcast %47 : vector<16x1xf32> to vector<16x32xf32>
    %49 = arith.mulf %41, %48 : vector<16x32xf32>
    %cst_30 = arith.constant 0.000000e+00 : bf16
    %50 = vector.broadcast %cst_30 : bf16 to vector<16x128xbf16>
    %c0_31 = arith.constant 0 : index
    %c0_32 = arith.constant 0 : index
    %51 = vector.load %arg11[%c0_31, %c0_32] : memref<16x128xbf16, #tpu.memory_space<vmem>>, vector<16x128xbf16>
    tpu.vector_store %arg11[%c0_31, %c0_32], %50 {strides = array<i32>} : memref<16x128xbf16, #tpu.memory_space<vmem>>, vector<16x128xbf16>,
    %52 = arith.truncf %24 : vector<16x32xf32> to vector<16x32xbf16>
    %c0_33 = arith.constant 0 : index
    %c0_34 = arith.constant 0 : index
    %53 = vector.load %arg11[%c0_33, %c0_34] : memref<16x128xbf16, #tpu.memory_space<vmem>>, vector<16x32xbf16>
    tpu.vector_store %arg11[%c0_33, %c0_34], %52 {strides = array<i32>} : memref<16x128xbf16, #tpu.memory_space<vmem>>, vector<16x32xbf16>,
    %54 = arith.truncf %49 : vector<16x32xf32> to vector<16x32xbf16>
    %c0_35 = arith.constant 0 : index
    %c32 = arith.constant 32 : index
    %55 = vector.load %arg11[%c0_35, %c32] : memref<16x128xbf16, #tpu.memory_space<vmem>>, vector<16x32xbf16>
    tpu.vector_store %arg11[%c0_35, %c32], %54 {strides = array<i32>} : memref<16x128xbf16, #tpu.memory_space<vmem>>, vector<16x32xbf16>,
    return
  }
  func.func @transform_0(%arg0: i32) -> (i32, i32) {
    %c0_i32 = arith.constant 0 : i32
    %c0_i32_0 = arith.constant 0 : i32
    return %arg0, %c0_i32 : i32, i32
  }
  func.func @transform_1(%arg0: i32) -> (i32, i32) {
    %c0_i32 = arith.constant 0 : i32
    %c0_i32_0 = arith.constant 0 : i32
    return %arg0, %c0_i32 : i32, i32
  }
  func.func @transform_2(%arg0: i32) -> (i32, i32) {
    %c0_i32 = arith.constant 0 : i32
    %c0_i32_0 = arith.constant 0 : i32
    %c0_i32_1 = arith.constant 0 : i32
    return %c0_i32, %c0_i32_0 : i32, i32
  }
  func.func @transform_3(%arg0: i32) -> (i32, i32) {
    %c0_i32 = arith.constant 0 : i32
    %c0_i32_0 = arith.constant 0 : i32
    %c0_i32_1 = arith.constant 0 : i32
    return %c0_i32, %c0_i32_0 : i32, i32
  }
  func.func @transform_4(%arg0: i32) -> (i32, i32) {
    %c0_i32 = arith.constant 0 : i32
    %c0_i32_0 = arith.constant 0 : i32
    %c0_i32_1 = arith.constant 0 : i32
    return %c0_i32, %c0_i32_0 : i32, i32
  }
  func.func @transform_5(%arg0: i32) -> (i32, i32) {
    %c0_i32 = arith.constant 0 : i32
    %c0_i32_0 = arith.constant 0 : i32
    %c0_i32_1 = arith.constant 0 : i32
    return %c0_i32, %c0_i32_0 : i32, i32
  }
  func.func @transform_6(%arg0: i32) -> (i32, i32) {
    %c0_i32 = arith.constant 0 : i32
    %c0_i32_0 = arith.constant 0 : i32
    %c0_i32_1 = arith.constant 0 : i32
    return %c0_i32, %c0_i32_0 : i32, i32
  }
  func.func @transform_7(%arg0: i32) -> (i32, i32) {
    %c0_i32 = arith.constant 0 : i32
    %c0_i32_0 = arith.constant 0 : i32
    %c0_i32_1 = arith.constant 0 : i32
    return %c0_i32, %c0_i32_0 : i32, i32
  }
  func.func @transform_8(%arg0: i32) -> (i32, i32) {
    %c0_i32 = arith.constant 0 : i32
    %c0_i32_0 = arith.constant 0 : i32
    %c0_i32_1 = arith.constant 0 : i32
    return %c0_i32, %c0_i32_0 : i32, i32
  }
  func.func @transform_9(%arg0: i32) -> (i32, i32) {
    %c0_i32 = arith.constant 0 : i32
    %c0_i32_0 = arith.constant 0 : i32
    %c0_i32_1 = arith.constant 0 : i32
    return %c0_i32, %c0_i32_0 : i32, i32
  }
  func.func @transform_10(%arg0: i32) -> (i32, i32) {
    %c0_i32 = arith.constant 0 : i32
    %c0_i32_0 = arith.constant 0 : i32
    return %arg0, %c0_i32 : i32, i32
  }
}

</mosaic_0001>

<llo_original>
// kernel: tpu_custom_call.1
$region0: #{tpu_custom_call.1}
  #allocation0 [shape = 'u32[]', space=smem, size = 0x4, offset = 0x4, fixed_abs, tag = 'smem constant byte address 0x4 - core index']
  #allocation1 [shape = 'u32[144,128]{1,0:T(1,128)}', space=vmem, size = 0x12000, scoped, tag = 'internal scratch']
  %s0 = inlined_call_operand.hbm [shape: bf16[16,64], index: 0, kind: input, shape index: {}]
  %s1 = inlined_call_operand.hbm [shape: bf16[16,48], index: 1, kind: input, shape index: {}]
  %s2 = inlined_call_operand.hbm [shape: bf16[64,128], index: 2, kind: input, shape index: {}]
  %s3 = inlined_call_operand.hbm [shape: f32[1,128], index: 3, kind: input, shape index: {}]
  %s4 = inlined_call_operand.hbm [shape: bf16[128,32], index: 4, kind: input, shape index: {}]
  %s5 = inlined_call_operand.hbm [shape: f32[1,32], index: 5, kind: input, shape index: {}]
  %s6 = inlined_call_operand.hbm [shape: bf16[48,128], index: 6, kind: input, shape index: {}]
  %s7 = inlined_call_operand.hbm [shape: f32[1,128], index: 7, kind: input, shape index: {}]
  %s8 = inlined_call_operand.hbm [shape: bf16[128,32], index: 8, kind: input, shape index: {}]
  %s9 = inlined_call_operand.hbm [shape: f32[1,32], index: 9, kind: input, shape index: {}]
  %s10 = inlined_call_operand.hbm [shape: bf16[16,128], index: 10, kind: output, shape index: {}]
  %s11 = sld [smem:[#allocation0]]
  $region90: #{tpu_custom_call.1} parent=0
    _
  %s13 = ssub.s32 1, %s11
  %s14 = scalar_select 0, %s13, %s11
  $region1: #{tpu_custom_call.1} parent=0
    #allocation2 [shape = 'u8[4096]{0}', space=vmem, size = 0x1000, scoped, tag = 'input window, operand 0, single buffered']
    #allocation3 [shape = 's32[1]{0}', space=sflag, size = 0x4, scoped, tag = 'scoped memory for tpu_custom_call.1']
    #allocation4 [shape = 's32[1]{0}', space=sflag, size = 0x4, scoped, tag = 'scoped memory for tpu_custom_call.1']
    #allocation5 [shape = 'u8[4096]{0}', space=vmem, size = 0x1000, scoped, tag = 'input window, operand 1, single buffered']
    #allocation6 [shape = 's32[1]{0}', space=sflag, size = 0x4, scoped, tag = 'scoped memory for tpu_custom_call.1']
    #allocation7 [shape = 'u8[16384]{0}', space=vmem, size = 0x4000, scoped, tag = 'input window, operand 2, single buffered']
    #allocation8 [shape = 'u8[512]{0}', space=vmem, size = 0x400, scoped, tag = 'input window, operand 3, single buffered']
    #allocation9 [shape = 's32[1]{0}', space=sflag, size = 0x4, scoped, tag = 'scoped memory for tpu_custom_call.1']
    #allocation10 [shape = 'u8[32768]{0}', space=vmem, size = 0x8000, scoped, tag = 'input window, operand 4, single buffered']
    #allocation11 [shape = 'u8[512]{0}', space=vmem, size = 0x400, scoped, tag = 'input window, operand 5, single buffered']
    #allocation12 [shape = 's32[1]{0}', space=sflag, size = 0x4, scoped, tag = 'scoped memory for tpu_custom_call.1']
    #allocation13 [shape = 'u8[12288]{0}', space=vmem, size = 0x3000, scoped, tag = 'input window, operand 6, single buffered']
    #allocation14 [shape = 'u8[512]{0}', space=vmem, size = 0x400, scoped, tag = 'input window, operand 7, single buffered']
    #allocation15 [shape = 's32[1]{0}', space=sflag, size = 0x4, scoped, tag = 'scoped memory for tpu_custom_call.1']
    #allocation16 [shape = 'u8[32768]{0}', space=vmem, size = 0x8000, scoped, tag = 'input window, operand 8, single buffered']
    #allocation17 [shape = 'u8[512]{0}', space=vmem, size = 0x400, scoped, tag = 'input window, operand 9, single buffered']
    #allocation18 [shape = 's32[1]{0}', space=sflag, size = 0x4, scoped, tag = 'scoped memory for tpu_custom_call.1']
    #allocation19 [shape = 'u8[4096]{0}', space=vmem, size = 0x1000, scoped, tag = 'output window, operand 0, single buffered']
    %15 = vsyncpa [#allocation3], 0
    %16 = vsyncpa [#allocation6], 0
    %17 = vsyncpa [#allocation9], 0
    %18 = vsyncpa [#allocation12], 0
    %19 = vsyncpa [#allocation15], 0
    %20 = vsyncpa [#allocation18], 0
    %21 = vsyncpa [#allocation4], 0
    // Predicated region
    $region2: #{tpu_custom_call.1} parent=1 // pred_check
      _
    $region3: #{tpu_custom_call.1} parent=1 // pred_check_branch
      %23 = sbr.rel (0) target = $region5
    $region4: #{tpu_custom_call.1} parent=1 // pred_region
      %s25 = ssub.s32 128, 128
      %26 = vsyncadd [#allocation3], %s25
      %s27 = sshll.u32 [#allocation2], 4
      %s28 = int_to_ptr.vmem [resolvable:$true] %s27
      %33 = dma.hbm_to_vmem [thread:$0]  %s0, 128, %s28, [#allocation3], 64, 64, 4
    $region5: #{tpu_custom_call.1} parent=1 // pred_fallthru
      _
    // Predicated region
    $region6: #{tpu_custom_call.1} parent=1 // pred_check
      _
    $region7: #{tpu_custom_call.1} parent=1 // pred_check_branch
      %35 = sbr.rel (0) target = $region9
    $region8: #{tpu_custom_call.1} parent=1 // pred_region
      %s37 = ssub.s32 128, 128
      %38 = vsyncadd [#allocation6], %s37
      %s39 = sshll.u32 [#allocation5], 4
      %s40 = int_to_ptr.vmem [resolvable:$true] %s39
      %45 = dma.hbm_to_vmem [thread:$0]  %s1, 128, %s40, [#allocation6], 64, 64, 4
    $region9: #{tpu_custom_call.1} parent=1 // pred_fallthru
      _
    // Predicated region
    $region10: #{tpu_custom_call.1} parent=1 // pred_check
      _
    $region11: #{tpu_custom_call.1} parent=1 // pred_check_branch
      %47 = sbr.rel (0) target = $region13
    $region12: #{tpu_custom_call.1} parent=1 // pred_region
      %s49 = ssub.s32 512, 512
      %50 = vsyncadd [#allocation6], %s49
      %s51 = sshll.u32 [#allocation7], 4
      %s52 = int_to_ptr.vmem [resolvable:$true] %s51
      %57 = dma.hbm_to_vmem [thread:$0]  %s2, 512, %s52, [#allocation6], 64, 64, 4
    $region13: #{tpu_custom_call.1} parent=1 // pred_fallthru
      _
    // Predicated region
    $region14: #{tpu_custom_call.1} parent=1 // pred_check
      _
    $region15: #{tpu_custom_call.1} parent=1 // pred_check_branch
      %59 = sbr.rel (0) target = $region17
    $region16: #{tpu_custom_call.1} parent=1 // pred_region
      %s61 = ssub.s32 16, 16
      %62 = vsyncadd [#allocation9], %s61
      %s64 = sshll.u32 [#allocation8], 4
      %s65 = int_to_ptr.vmem [resolvable:$true] %s64
      %67 = dma.hbm_to_vmem [thread:$0]  %s3, 16, %s65, [#allocation9]
    $region17: #{tpu_custom_call.1} parent=1 // pred_fallthru
      _
    // Predicated region
    $region18: #{tpu_custom_call.1} parent=1 // pred_check
      _
    $region19: #{tpu_custom_call.1} parent=1 // pred_check_branch
      %69 = sbr.rel (0) target = $region21
    $region20: #{tpu_custom_call.1} parent=1 // pred_region
      %s71 = ssub.s32 1024, 1024
      %72 = vsyncadd [#allocation9], %s71
      %s73 = sshll.u32 [#allocation10], 4
      %s74 = int_to_ptr.vmem [resolvable:$true] %s73
      %79 = dma.hbm_to_vmem [thread:$0]  %s4, 1024, %s74, [#allocation9], 64, 64, 4
    $region21: #{tpu_custom_call.1} parent=1 // pred_fallthru
      _
    // Predicated region
    $region22: #{tpu_custom_call.1} parent=1 // pred_check
      _
    $region23: #{tpu_custom_call.1} parent=1 // pred_check_branch
      %81 = sbr.rel (0) target = $region25
    $region24: #{tpu_custom_call.1} parent=1 // pred_region
      %s83 = ssub.s32 16, 16
      %84 = vsyncadd [#allocation12], %s83
      %s86 = sshll.u32 [#allocation11], 4
      %s87 = int_to_ptr.vmem [resolvable:$true] %s86
      %89 = dma.hbm_to_vmem [thread:$0]  %s5, 16, %s87, [#allocation12]
    $region25: #{tpu_custom_call.1} parent=1 // pred_fallthru
      _
    // Predicated region
    $region26: #{tpu_custom_call.1} parent=1 // pred_check
      _
    $region27: #{tpu_custom_call.1} parent=1 // pred_check_branch
      %91 = sbr.rel (0) target = $region29
    $region28: #{tpu_custom_call.1} parent=1 // pred_region
      %s93 = ssub.s32 384, 384
      %94 = vsyncadd [#allocation12], %s93
      %s95 = sshll.u32 [#allocation13], 4
      %s96 = int_to_ptr.vmem [resolvable:$true] %s95
      %101 = dma.hbm_to_vmem [thread:$0]  %s6, 384, %s96, [#allocation12], 64, 64, 4
    $region29: #{tpu_custom_call.1} parent=1 // pred_fallthru
      _
    // Predicated region
    $region30: #{tpu_custom_call.1} parent=1 // pred_check
      _
    $region31: #{tpu_custom_call.1} parent=1 // pred_check_branch
      %103 = sbr.rel (0) target = $region33
    $region32: #{tpu_custom_call.1} parent=1 // pred_region
      %s105 = ssub.s32 16, 16
      %106 = vsyncadd [#allocation15], %s105
      %s108 = sshll.u32 [#allocation14], 4
      %s109 = int_to_ptr.vmem [resolvable:$true] %s108
      %111 = dma.hbm_to_vmem [thread:$0]  %s7, 16, %s109, [#allocation15]
    $region33: #{tpu_custom_call.1} parent=1 // pred_fallthru
      _
    // Predicated region
    $region34: #{tpu_custom_call.1} parent=1 // pred_check
      _
    $region35: #{tpu_custom_call.1} parent=1 // pred_check_branch
      %113 = sbr.rel (0) target = $region37
    $region36: #{tpu_custom_call.1} parent=1 // pred_region
      %s115 = ssub.s32 1024, 1024
      %116 = vsyncadd [#allocation15], %s115
      %s117 = sshll.u32 [#allocation16], 4
      %s118 = int_to_ptr.vmem [resolvable:$true] %s117
      %123 = dma.hbm_to_vmem [thread:$0]  %s8, 1024, %s118, [#allocation15], 64, 64, 4
    $region37: #{tpu_custom_call.1} parent=1 // pred_fallthru
      _
    // Predicated region
    $region38: #{tpu_custom_call.1} parent=1 // pred_check
      _
    $region39: #{tpu_custom_call.1} parent=1 // pred_check_branch
      %125 = sbr.rel (0) target = $region41
    $region40: #{tpu_custom_call.1} parent=1 // pred_region
      %s127 = ssub.s32 16, 16
      %128 = vsyncadd [#allocation18], %s127
      %s130 = sshll.u32 [#allocation17], 4
      %s131 = int_to_ptr.vmem [resolvable:$true] %s130
      %133 = dma.hbm_to_vmem [thread:$0]  %s9, 16, %s131, [#allocation18]
    $region41: #{tpu_custom_call.1} parent=1 // pred_fallthru
      _
    // Predicated region
    $region42: #{tpu_custom_call.1} parent=1 // pred_check
      _
    $region43: #{tpu_custom_call.1} parent=1 // pred_check_branch
      %135 = sbr.rel (0) target = $region45
    $region44: #{tpu_custom_call.1} parent=1 // pred_region
      %136 = dma.done [#allocation3], 128
    $region45: #{tpu_custom_call.1} parent=1 // pred_fallthru
      _
    // Predicated region
    $region46: #{tpu_custom_call.1} parent=1 // pred_check
      _
    $region47: #{tpu_custom_call.1} parent=1 // pred_check_branch
      %138 = sbr.rel (0) target = $region49
    $region48: #{tpu_custom_call.1} parent=1 // pred_region
      %139 = dma.done [#allocation6], 128
    $region49: #{tpu_custom_call.1} parent=1 // pred_fallthru
      _
    // Predicated region
    $region50: #{tpu_custom_call.1} parent=1 // pred_check
      _
    $region51: #{tpu_custom_call.1} parent=1 // pred_check_branch
      %141 = sbr.rel (0) target = $region53
    $region52: #{tpu_custom_call.1} parent=1 // pred_region
      %142 = dma.done [#allocation6], 512
    $region53: #{tpu_custom_call.1} parent=1 // pred_fallthru
      _
    // Predicated region
    $region54: #{tpu_custom_call.1} parent=1 // pred_check
      _
    $region55: #{tpu_custom_call.1} parent=1 // pred_check_branch
      %144 = sbr.rel (0) target = $region57
    $region56: #{tpu_custom_call.1} parent=1 // pred_region
      %145 = dma.done [#allocation9], 16
    $region57: #{tpu_custom_call.1} parent=1 // pred_fallthru
      _
    // Predicated region
    $region58: #{tpu_custom_call.1} parent=1 // pred_check
      _
    $region59: #{tpu_custom_call.1} parent=1 // pred_check_branch
      %147 = sbr.rel (0) target = $region61
    $region60: #{tpu_custom_call.1} parent=1 // pred_region
      %148 = dma.done [#allocation9], 1024
    $region61: #{tpu_custom_call.1} parent=1 // pred_fallthru
      _
    // Predicated region
    $region62: #{tpu_custom_call.1} parent=1 // pred_check
      _
    $region63: #{tpu_custom_call.1} parent=1 // pred_check_branch
      %150 = sbr.rel (0) target = $region65
    $region64: #{tpu_custom_call.1} parent=1 // pred_region
      %151 = dma.done [#allocation12], 16
    $region65: #{tpu_custom_call.1} parent=1 // pred_fallthru
      _
    // Predicated region
    $region66: #{tpu_custom_call.1} parent=1 // pred_check
      _
    $region67: #{tpu_custom_call.1} parent=1 // pred_check_branch
      %153 = sbr.rel (0) target = $region69
    $region68: #{tpu_custom_call.1} parent=1 // pred_region
      %154 = dma.done [#allocation12], 384
    $region69: #{tpu_custom_call.1} parent=1 // pred_fallthru
      _
    // Predicated region
    $region70: #{tpu_custom_call.1} parent=1 // pred_check
      _
    $region71: #{tpu_custom_call.1} parent=1 // pred_check_branch
      %156 = sbr.rel (0) target = $region73
    $region72: #{tpu_custom_call.1} parent=1 // pred_region
      %157 = dma.done [#allocation15], 16
    $region73: #{tpu_custom_call.1} parent=1 // pred_fallthru
      _
    // Predicated region
    $region74: #{tpu_custom_call.1} parent=1 // pred_check
      _
    $region75: #{tpu_custom_call.1} parent=1 // pred_check_branch
      %159 = sbr.rel (0) target = $region77
    $region76: #{tpu_custom_call.1} parent=1 // pred_region
      %160 = dma.done [#allocation15], 1024
    $region77: #{tpu_custom_call.1} parent=1 // pred_fallthru
      _
    // Predicated region
    $region78: #{tpu_custom_call.1} parent=1 // pred_check
      _
    $region79: #{tpu_custom_call.1} parent=1 // pred_check_branch
      %162 = sbr.rel (0) target = $region81
    $region80: #{tpu_custom_call.1} parent=1 // pred_region
      %163 = dma.done [#allocation18], 16
    $region81: #{tpu_custom_call.1} parent=1 // pred_fallthru
      _
    %v165 = vld [vmem:[#allocation2] sm:$0xf]
    %v166 = vld [vmem:[#allocation2 + $0x4] sm:$0xf]
    %v167 = vld [vmem:[#allocation7] sm:$0xf]
    %v168 = vld [vmem:[#allocation7 + $0x4] sm:$0xf]
    %v169 = vld [vmem:[#allocation7 + $0x8] sm:$0xf]
    %v170 = vld [vmem:[#allocation7 + $0xc] sm:$0xf]
    %v171 = vld [vmem:[#allocation7 + $0x10] sm:$0xf]
    %v172 = vld [vmem:[#allocation7 + $0x14] sm:$0xf]
    %v173 = vld [vmem:[#allocation7 + $0x18] sm:$0xf]
    %v174 = vld [vmem:[#allocation7 + $0x1c] sm:$0xf]
    %v175 = vld [vmem:[#allocation8] sm:$0x1]
    %v176 = vld [vmem:[#allocation10] sm:$0xf]
    %v177 = vld [vmem:[#allocation10 + $0x4] sm:$0xf]
    %v178 = vld [vmem:[#allocation10 + $0x8] sm:$0xf]
    %v179 = vld [vmem:[#allocation10 + $0xc] sm:$0xf]
    %v180 = vld [vmem:[#allocation10 + $0x10] sm:$0xf]
    %v181 = vld [vmem:[#allocation10 + $0x14] sm:$0xf]
    %v182 = vld [vmem:[#allocation10 + $0x18] sm:$0xf]
    %v183 = vld [vmem:[#allocation10 + $0x1c] sm:$0xf]
    %v184 = vld [vmem:[#allocation10 + $0x20] sm:$0xf]
    %v185 = vld [vmem:[#allocation10 + $0x24] sm:$0xf]
    %v186 = vld [vmem:[#allocation10 + $0x28] sm:$0xf]
    %v187 = vld [vmem:[#allocation10 + $0x2c] sm:$0xf]
    %v188 = vld [vmem:[#allocation10 + $0x30] sm:$0xf]
    %v189 = vld [vmem:[#allocation10 + $0x34] sm:$0xf]
    %v190 = vld [vmem:[#allocation10 + $0x38] sm:$0xf]
    %v191 = vld [vmem:[#allocation10 + $0x3c] sm:$0xf]
    %v192 = vld [vmem:[#allocation11] sm:$0x1]
    %v194 = vlaneseq
    %v195 = vshrl.u32 %v194, 7
    %v196 = vsub.s32 0, %v195
    %v197 = vrot.slane %v175, %v196
    %v201 = vunpack.c.l.b16 %v165
    %v202 = vunpack.c.l.b16 %v166
    %v203 = vpack.c.b16 %v202, %v201
    %v212 = vunpack.c.l.b16 %v167
    %v213 = vunpack.c.l.b16 %v168
    %v214 = vunpack.c.l.b16 %v169
    %v215 = vunpack.c.l.b16 %v170
    %v216 = vunpack.c.l.b16 %v171
    %v217 = vunpack.c.l.b16 %v172
    %v218 = vunpack.c.l.b16 %v173
    %v219 = vunpack.c.l.b16 %v174
    %v220 = vpack.c.b16 %v213, %v212
    %v221 = vpack.c.b16 %v215, %v214
    %v222 = vpack.c.b16 %v217, %v216
    %v223 = vpack.c.b16 %v219, %v218
    %vm228 = vcmask 523264
    %v230 = vsel %vm228, %v203, 0
    %232 = vmatprep.subr.bf16.mxu0 0
    %233 = vmatpush1.bf16.msra.mxu0 %v220
    %234 = vmatprep.subr.bf16.mxu0 0
    %235 = vmatpush1.bf16.msra.mxu0 %v221
    %236 = vmatprep.subr.bf16.mxu0 0
    %237 = vmatpush1.bf16.msra.mxu0 %v222
    %238 = vmatprep.subr.bf16.mxu0 0
    %239 = vmatpush1.bf16.msra.mxu0 %v223
    %240 = vmatprep.subr.bf16.mxu0 0
    %241 = vmatpush1.bf16.msra.mxu0 0
    %242 = vmatprep.subr.bf16.mxu0 0
    %243 = vmatpush1.bf16.msra.mxu0 0
    %244 = vmatprep.subr.bf16.mxu0 0
    %245 = vmatpush1.bf16.msra.mxu0 0
    %246 = vmatprep.subr.bf16.mxu0 0
    %247 = vmatpush1.bf16.msra.mxu0 0
    %248 = vmatprep.subr.bf16.mxu0 0
    %249 = vmatpush1.bf16.msra.mxu0 0
    %250 = vmatprep.subr.bf16.mxu0 0
    %251 = vmatpush1.bf16.msra.mxu0 0
    %252 = vmatprep.subr.bf16.mxu0 0
    %253 = vmatpush1.bf16.msra.mxu0 0
    %254 = vmatprep.subr.bf16.mxu0 0
    %255 = vmatpush1.bf16.msra.mxu0 0
    %256 = vmatprep.subr.bf16.mxu0 0
    %257 = vmatpush1.bf16.msra.mxu0 0
    %258 = vmatprep.subr.bf16.mxu0 0
    %259 = vmatpush1.bf16.msra.mxu0 0
    %260 = vmatprep.subr.bf16.mxu0 0
    %261 = vmatpush1.bf16.msra.mxu0 0
    %262 = vmatprep.subr.bf16.mxu0 0
    %263 = vmatpush1.bf16.msra.mxu0 0
    %264 = vmatprep.mubr.bf16.mxu0 0
    %265 = vmatmul.mubr.bf16.gmra.mrb[0].mxu0 %v230
    %v266 = vpop.f32.mrb[0].mxu0
    %v267 = vadd.f32 %v197, %v266
    %v268 = vpop.f32.mrb[0].mxu0
    %v269 = vpop.f32.mrb[0].mxu0
    %v270 = vadd.f32 %v197, %v269
    %v271 = vpop.f32.mrb[0].mxu0
    %272 = vdwg.mxu0
    %vm273 = vcmp.ge.f32.partialorder %v267, 0.0
    %vm274 = vcmp.ge.f32.partialorder %v270, 0.0
    %v275 = vmul.f32 %v267, 0.01
    %v276 = vmul.f32 %v270, 0.01
    %v277 = vsel %vm273, %v267, %v275
    %v278 = vsel %vm274, %v270, %v276
    %v279 = vpack.c.bf16 %v278, %v277
    %v281 = vlaneseq
    %v282 = vshrl.u32 %v281, 7
    %v283 = vsub.s32 0, %v282
    %v284 = vrot.slane %v192, %v283
    %v302 = vunpack.c.l.b16 %v176
    %v303 = vunpack.c.l.b16 %v177
    %v304 = vunpack.c.l.b16 %v178
    %v305 = vunpack.c.l.b16 %v179
    %v306 = vunpack.c.l.b16 %v180
    %v307 = vunpack.c.l.b16 %v181
    %v308 = vunpack.c.l.b16 %v182
    %v309 = vunpack.c.l.b16 %v183
    %v310 = vunpack.c.l.b16 %v184
    %v311 = vunpack.c.l.b16 %v185
    %v312 = vunpack.c.l.b16 %v186
    %v313 = vunpack.c.l.b16 %v187
    %v314 = vunpack.c.l.b16 %v188
    %v315 = vunpack.c.l.b16 %v189
    %v316 = vunpack.c.l.b16 %v190
    %v317 = vunpack.c.l.b16 %v191
    %v318 = vpack.c.b16 %v303, %v302
    %v319 = vpack.c.b16 %v305, %v304
    %v320 = vpack.c.b16 %v307, %v306
    %v321 = vpack.c.b16 %v309, %v308
    %v322 = vpack.c.b16 %v311, %v310
    %v323 = vpack.c.b16 %v313, %v312
    %v324 = vpack.c.b16 %v315, %v314
    %v325 = vpack.c.b16 %v317, %v316
    %334 = vmatprep.subr.bf16.mxu0 0
    %335 = vmatpush1.bf16.msra.mxu0 %v318
    %336 = vmatprep.subr.bf16.mxu0 0
    %337 = vmatpush1.bf16.msra.mxu0 %v319
    %338 = vmatprep.subr.bf16.mxu0 0
    %339 = vmatpush1.bf16.msra.mxu0 %v320
    %340 = vmatprep.subr.bf16.mxu0 0
    %341 = vmatpush1.bf16.msra.mxu0 %v321
    %342 = vmatprep.subr.bf16.mxu0 0
    %343 = vmatpush1.bf16.msra.mxu0 %v322
    %344 = vmatprep.subr.bf16.mxu0 0
    %345 = vmatpush1.bf16.msra.mxu0 %v323
    %346 = vmatprep.subr.bf16.mxu0 0
    %347 = vmatpush1.bf16.msra.mxu0 %v324
    %348 = vmatprep.subr.bf16.mxu0 0
    %349 = vmatpush1.bf16.msra.mxu0 %v325
    %350 = vmatprep.subr.bf16.mxu0 0
    %351 = vmatpush1.bf16.msra.mxu0 0
    %352 = vmatprep.subr.bf16.mxu0 0
    %353 = vmatpush1.bf16.msra.mxu0 0
    %354 = vmatprep.subr.bf16.mxu0 0
    %355 = vmatpush1.bf16.msra.mxu0 0
    %356 = vmatprep.subr.bf16.mxu0 0
    %357 = vmatpush1.bf16.msra.mxu0 0
    %358 = vmatprep.subr.bf16.mxu0 0
    %359 = vmatpush1.bf16.msra.mxu0 0
    %360 = vmatprep.subr.bf16.mxu0 0
    %361 = vmatpush1.bf16.msra.mxu0 0
    %362 = vmatprep.subr.bf16.mxu0 0
    %363 = vmatpush1.bf16.msra.mxu0 0
    %364 = vmatprep.subr.bf16.mxu0 0
    %365 = vmatpush1.bf16.msra.mxu0 0
    %366 = vmatprep.mubr.bf16.mxu0 0
    %367 = vmatmul.mubr.bf16.gmra.mrb[0].mxu0 %v279
    %v368 = vpop.f32.mrb[0].mxu0
    %v369 = vadd.f32 %v284, %v368
    %v370 = vpop.f32.mrb[0].mxu0
    %v371 = vpop.f32.mrb[0].mxu0
    %v372 = vadd.f32 %v284, %v371
    %v373 = vpop.f32.mrb[0].mxu0
    %374 = vdwg.mxu0
    %v375 = vmul.f32 %v369, %v369
    %v376 = vmul.f32 %v372, %v372
    %vm377 = vcmask 261120
    %v378 = vsel %vm377, %v375, 0.0
    %379 = vadd.xlane.f32.xlu0 %v378
    %v380 = vpop.xlane.xlu0 %379
    %v381 = vsel %vm377, %v376, 0.0
    %382 = vadd.xlane.f32.xlu0 %v381
    %v383 = vpop.xlane.xlu0 %382
    %v384 = vmax.f32 %v380, 1e-20
    %v385 = vmax.f32 %v383, 1e-20
    %v386 = vrsqrt.pop %v384
    %v387 = vrsqrt.pop %v385
    %v388 = vmul.f32 %v369, %v386
    %v389 = vmul.f32 %v372, %v387
    %v390 = vld [vmem:[#allocation5] sm:$0xf]
    %v391 = vld [vmem:[#allocation5 + $0x4] sm:$0xf]
    %v392 = vld [vmem:[#allocation13] sm:$0xf]
    %v393 = vld [vmem:[#allocation13 + $0x4] sm:$0xf]
    %v394 = vld [vmem:[#allocation13 + $0x8] sm:$0xf]
    %v395 = vld [vmem:[#allocation13 + $0xc] sm:$0xf]
    %v396 = vld [vmem:[#allocation13 + $0x10] sm:$0xf]
    %v397 = vld [vmem:[#allocation13 + $0x14] sm:$0xf]
    %v398 = vld [vmem:[#allocation14] sm:$0x1]
    %v399 = vld [vmem:[#allocation16] sm:$0xf]
    %v400 = vld [vmem:[#allocation16 + $0x4] sm:$0xf]
    %v401 = vld [vmem:[#allocation16 + $0x8] sm:$0xf]
    %v402 = vld [vmem:[#allocation16 + $0xc] sm:$0xf]
    %v403 = vld [vmem:[#allocation16 + $0x10] sm:$0xf]
    %v404 = vld [vmem:[#allocation16 + $0x14] sm:$0xf]
    %v405 = vld [vmem:[#allocation16 + $0x18] sm:$0xf]
    %v406 = vld [vmem:[#allocation16 + $0x1c] sm:$0xf]
    %v407 = vld [vmem:[#allocation16 + $0x20] sm:$0xf]
    %v408 = vld [vmem:[#allocation16 + $0x24] sm:$0xf]
    %v409 = vld [vmem:[#allocation16 + $0x28] sm:$0xf]
    %v410 = vld [vmem:[#allocation16 + $0x2c] sm:$0xf]
    %v411 = vld [vmem:[#allocation16 + $0x30] sm:$0xf]
    %v412 = vld [vmem:[#allocation16 + $0x34] sm:$0xf]
    %v413 = vld [vmem:[#allocation16 + $0x38] sm:$0xf]
    %v414 = vld [vmem:[#allocation16 + $0x3c] sm:$0xf]
    %v415 = vld [vmem:[#allocation17] sm:$0x1]
    %v417 = vlaneseq
    %v418 = vshrl.u32 %v417, 7
    %v419 = vsub.s32 0, %v418
    %v420 = vrot.slane %v398, %v419
    %v424 = vunpack.c.l.b16 %v390
    %v425 = vunpack.c.l.b16 %v391
    %v426 = vpack.c.b16 %v425, %v424
    %v433 = vunpack.c.l.b16 %v392
    %v434 = vunpack.c.l.b16 %v393
    %v435 = vunpack.c.l.b16 %v394
    %v436 = vunpack.c.l.b16 %v395
    %v437 = vunpack.c.l.b16 %v396
    %v438 = vunpack.c.l.b16 %v397
    %v439 = vpack.c.b16 %v434, %v433
    %v440 = vpack.c.b16 %v436, %v435
    %v441 = vpack.c.b16 %v438, %v437
    %vm445 = vcmask 392192
    %v447 = vsel %vm445, %v426, 0
    %449 = vmatprep.subr.bf16.mxu0 0
    %450 = vmatpush1.bf16.msra.mxu0 %v439
    %451 = vmatprep.subr.bf16.mxu0 0
    %452 = vmatpush1.bf16.msra.mxu0 %v440
    %453 = vmatprep.subr.bf16.mxu0 0
    %454 = vmatpush1.bf16.msra.mxu0 %v441
    %455 = vmatprep.subr.bf16.mxu0 0
    %456 = vmatpush1.bf16.msra.mxu0 0
    %457 = vmatprep.subr.bf16.mxu0 0
    %458 = vmatpush1.bf16.msra.mxu0 0
    %459 = vmatprep.subr.bf16.mxu0 0
    %460 = vmatpush1.bf16.msra.mxu0 0
    %461 = vmatprep.subr.bf16.mxu0 0
    %462 = vmatpush1.bf16.msra.mxu0 0
    %463 = vmatprep.subr.bf16.mxu0 0
    %464 = vmatpush1.bf16.msra.mxu0 0
    %465 = vmatprep.subr.bf16.mxu0 0
    %466 = vmatpush1.bf16.msra.mxu0 0
    %467 = vmatprep.subr.bf16.mxu0 0
    %468 = vmatpush1.bf16.msra.mxu0 0
    %469 = vmatprep.subr.bf16.mxu0 0
    %470 = vmatpush1.bf16.msra.mxu0 0
    %471 = vmatprep.subr.bf16.mxu0 0
    %472 = vmatpush1.bf16.msra.mxu0 0
    %473 = vmatprep.subr.bf16.mxu0 0
    %474 = vmatpush1.bf16.msra.mxu0 0
    %475 = vmatprep.subr.bf16.mxu0 0
    %476 = vmatpush1.bf16.msra.mxu0 0
    %477 = vmatprep.subr.bf16.mxu0 0
    %478 = vmatpush1.bf16.msra.mxu0 0
    %479 = vmatprep.subr.bf16.mxu0 0
    %480 = vmatpush1.bf16.msra.mxu0 0
    %481 = vmatprep.mubr.bf16.mxu0 0
    %482 = vmatmul.mubr.bf16.gmra.mrb[0].mxu0 %v447
    %v483 = vpop.f32.mrb[0].mxu0
    %v484 = vadd.f32 %v420, %v483
    %v485 = vpop.f32.mrb[0].mxu0
    %v486 = vpop.f32.mrb[0].mxu0
    %v487 = vadd.f32 %v420, %v486
    %v488 = vpop.f32.mrb[0].mxu0
    %489 = vdwg.mxu0
    %vm490 = vcmp.ge.f32.partialorder %v484, 0.0
    %vm491 = vcmp.ge.f32.partialorder %v487, 0.0
    %v492 = vmul.f32 %v484, 0.01
    %v493 = vmul.f32 %v487, 0.01
    %v494 = vsel %vm490, %v484, %v492
    %v495 = vsel %vm491, %v487, %v493
    %v496 = vpack.c.bf16 %v495, %v494
    %v498 = vlaneseq
    %v499 = vshrl.u32 %v498, 7
    %v500 = vsub.s32 0, %v499
    %v501 = vrot.slane %v415, %v500
    %v519 = vunpack.c.l.b16 %v399
    %v520 = vunpack.c.l.b16 %v400
    %v521 = vunpack.c.l.b16 %v401
    %v522 = vunpack.c.l.b16 %v402
    %v523 = vunpack.c.l.b16 %v403
    %v524 = vunpack.c.l.b16 %v404
    %v525 = vunpack.c.l.b16 %v405
    %v526 = vunpack.c.l.b16 %v406
    %v527 = vunpack.c.l.b16 %v407
    %v528 = vunpack.c.l.b16 %v408
    %v529 = vunpack.c.l.b16 %v409
    %v530 = vunpack.c.l.b16 %v410
    %v531 = vunpack.c.l.b16 %v411
    %v532 = vunpack.c.l.b16 %v412
    %v533 = vunpack.c.l.b16 %v413
    %v534 = vunpack.c.l.b16 %v414
    %v535 = vpack.c.b16 %v520, %v519
    %v536 = vpack.c.b16 %v522, %v521
    %v537 = vpack.c.b16 %v524, %v523
    %v538 = vpack.c.b16 %v526, %v525
    %v539 = vpack.c.b16 %v528, %v527
    %v540 = vpack.c.b16 %v530, %v529
    %v541 = vpack.c.b16 %v532, %v531
    %v542 = vpack.c.b16 %v534, %v533
    %551 = vmatprep.subr.bf16.mxu0 0
    %552 = vmatpush1.bf16.msra.mxu0 %v535
    %553 = vmatprep.subr.bf16.mxu0 0
    %554 = vmatpush1.bf16.msra.mxu0 %v536
    %555 = vmatprep.subr.bf16.mxu0 0
    %556 = vmatpush1.bf16.msra.mxu0 %v537
    %557 = vmatprep.subr.bf16.mxu0 0
    %558 = vmatpush1.bf16.msra.mxu0 %v538
    %559 = vmatprep.subr.bf16.mxu0 0
    %560 = vmatpush1.bf16.msra.mxu0 %v539
    %561 = vmatprep.subr.bf16.mxu0 0
    %562 = vmatpush1.bf16.msra.mxu0 %v540
    %563 = vmatprep.subr.bf16.mxu0 0
    %564 = vmatpush1.bf16.msra.mxu0 %v541
    %565 = vmatprep.subr.bf16.mxu0 0
    %566 = vmatpush1.bf16.msra.mxu0 %v542
    %567 = vmatprep.subr.bf16.mxu0 0
    %568 = vmatpush1.bf16.msra.mxu0 0
    %569 = vmatprep.subr.bf16.mxu0 0
    %570 = vmatpush1.bf16.msra.mxu0 0
    %571 = vmatprep.subr.bf16.mxu0 0
    %572 = vmatpush1.bf16.msra.mxu0 0
    %573 = vmatprep.subr.bf16.mxu0 0
    %574 = vmatpush1.bf16.msra.mxu0 0
    %575 = vmatprep.subr.bf16.mxu0 0
    %576 = vmatpush1.bf16.msra.mxu0 0
    %577 = vmatprep.subr.bf16.mxu0 0
    %578 = vmatpush1.bf16.msra.mxu0 0
    %579 = vmatprep.subr.bf16.mxu0 0
    %580 = vmatpush1.bf16.msra.mxu0 0
    %581 = vmatprep.subr.bf16.mxu0 0
    %582 = vmatpush1.bf16.msra.mxu0 0
    %583 = vmatprep.mubr.bf16.mxu0 0
    %584 = vmatmul.mubr.bf16.gmra.mrb[0].mxu0 %v496
    %v585 = vpop.f32.mrb[0].mxu0
    %v586 = vadd.f32 %v501, %v585
    %v587 = vpop.f32.mrb[0].mxu0
    %v588 = vpop.f32.mrb[0].mxu0
    %v589 = vadd.f32 %v501, %v588
    %v590 = vpop.f32.mrb[0].mxu0
    %591 = vdwg.mxu0
    %v592 = vmul.f32 %v586, %v586
    %v593 = vmul.f32 %v589, %v589
    %v594 = vsel %vm377, %v592, 0.0
    %595 = vadd.xlane.f32.xlu0 %v594
    %v596 = vpop.xlane.xlu0 %595
    %v597 = vsel %vm377, %v593, 0.0
    %598 = vadd.xlane.f32.xlu0 %v597
    %v599 = vpop.xlane.xlu0 %598
    %v600 = vmax.f32 %v596, 1e-20
    %v601 = vmax.f32 %v599, 1e-20
    %v602 = vrsqrt.pop %v600
    %v603 = vrsqrt.pop %v601
    %v604 = vmul.f32 %v586, %v602
    %v605 = vmul.f32 %v589, %v603
    %606 = vst [vmem:[#allocation19] sm:$0xf] 0
    %607 = vst [vmem:[#allocation19 + $0x4] sm:$0xf] 0
    %v608 = vpack.c.bf16 %v389, %v388
    %v610 = vunpack.c.l.b16 %v608
    %v611 = vunpack.c.h.b16 %v608
    %v612 = vpack.c.b16 %v610, %v610
    %v613 = vpack.c.b16 %v611, %v611
    %vm616 = vcmask 257024
    %617 = vst.msk [vmem:[#allocation19] sm:$0xf] %vm616, %v612
    %618 = vst.msk [vmem:[#allocation19 + $0x4] sm:$0xf] %vm616, %v613
    %v619 = vpack.c.bf16 %v605, %v604
    %v621 = vunpack.c.l.b16 %v619
    %v622 = vunpack.c.h.b16 %v619
    %v623 = vpack.c.b16 %v621, %v621
    %v624 = vpack.c.b16 %v622, %v622
    %625 = vrot.lane.b32.xlu0 %v623, 32
    %v626 = vpop.permute.xlu0 %625
    %627 = vrot.lane.b32.xlu0 %v624, 32
    %v628 = vpop.permute.xlu0 %627
    %vm631 = vcmask 519424
    %632 = vst.msk [vmem:[#allocation19] sm:$0xf] %vm631, %v626
    %633 = vst.msk [vmem:[#allocation19 + $0x4] sm:$0xf] %vm631, %v628
    // Predicated region
    $region82: #{tpu_custom_call.1} parent=1 // pred_check
      _
    $region83: #{tpu_custom_call.1} parent=1 // pred_check_branch
      %635 = sbr.rel (0) target = $region85
    $region84: #{tpu_custom_call.1} parent=1 // pred_region
      %s637 = ssub.s32 128, 128
      %638 = vsyncadd [#allocation4], %s637
      %s639 = sshll.u32 [#allocation19], 4
      %s640 = int_to_ptr.vmem [resolvable:$true] %s639
      %645 = dma.vmem_to_hbm [thread:$0]  %s640, 128, %s10, [#allocation4], 64, 64, 4
    $region85: #{tpu_custom_call.1} parent=1 // pred_fallthru
      _
    // Predicated region
    $region86: #{tpu_custom_call.1} parent=1 // pred_check
      _
    $region87: #{tpu_custom_call.1} parent=1 // pred_check_branch
      %647 = sbr.rel (0) target = $region89
    $region88: #{tpu_custom_call.1} parent=1 // pred_region
      %648 = dma.done [#allocation4], 128
    $region89: #{tpu_custom_call.1} parent=1 // pred_fallthru
      _
    %649 = vsyncpa [#allocation3], 1
    %650 = vsyncpa [#allocation6], 1
    %651 = vsyncpa [#allocation9], 1
    %652 = vsyncpa [#allocation12], 1
    %653 = vsyncpa [#allocation15], 1
    %654 = vsyncpa [#allocation18], 1
    %655 = vsyncpa [#allocation4], 1

</llo_original>
